<compile_context>
chip_gen: v6e
topology: v6e:2x2x1
jax: 0.10.0
libtpu: 0.0.40
codegen_flags: <defaults>
</compile_context>

<pallas_src>
import functools

import jax
import jax.numpy as jnp
from jax.experimental import pallas as pl
from jax.experimental.pallas import tpu as pltpu

NUM_NEURONS = 100      # hidden width of fc1 / BatchNorm1d, fixed by the module
HID_PAD = 128          # lane-aligned hidden width
BN_EPS = 1e-5          # PyTorch BatchNorm1d default eps


def _round_up(n, m):
    return ((n + m - 1) // m) * m


# --------------------------------------------------------------------------- #
# Pass 1: fc1 + ReLU, per-tile shifted batch statistics (stats only, parallel).
# --------------------------------------------------------------------------- #
def _stats_kernel(x_ref, w1_ref, b1_ref, psum_ref, psumsq_ref):
    b1 = b1_ref[...]                                               # (1, 128)
    h = jnp.dot(x_ref[...], w1_ref[...], preferred_element_type=jnp.float32)
    h = jnp.maximum(h + b1, 0.0)                                   # (tile_b, 128)
    # Shift by relu(b1): zero-padded batch rows give h == relu(b1) exactly,
    # so they contribute 0 to both shifted sums (no mask, no correction), and
    # the shift reduces E[h^2] - mean^2 cancellation.
    hs = h - jnp.maximum(b1, 0.0)
    psum_ref[...] = jnp.sum(hs, axis=0, keepdims=True)[None]        # (1, 1, 128)
    psumsq_ref[...] = jnp.sum(hs * hs, axis=0, keepdims=True)[None]  # (1, 1, 128)


# --------------------------------------------------------------------------- #
# Pass 2: recompute fc1 + ReLU, folded BN + spread, single fused fc2 matmul.
# --------------------------------------------------------------------------- #
def _spread_fc2_kernel(x_ref, w1_ref, b1_ref, a_ref, c_ref, w2_ref, b2_ref,
                       out_ref, spread_ref, *, spread_factor):
    h = jnp.dot(x_ref[...], w1_ref[...], preferred_element_type=jnp.float32)
    h = jnp.maximum(h + b1_ref[...], 0.0)                          # (tile_b, 128)

    # Folded algebra: x_prime = sf*(z+4)/8 with z = (h-mean)*inv_std and a
    # gamma==0 guard, precomputed per-lane in the wrapper as x_prime = h*a + c.
    x_prime = h * a_ref[...] + c_ref[...]                          # (tile_b, 128)

    # Build the full (tile_b, sf*128) spread slab in VMEM, then one fused
    # K = sf*128 MXU contraction (no per-plane acc-add chain).
    for r in range(spread_factor):
        if spread_factor == 1:
            # centroid 0.5 is both the first and last -> plane is all ones.
            plane = jnp.ones_like(x_prime)
        elif r == 0:                      # centroid 0.5: 1 below, ramp above
            plane = jnp.clip(1.5 - x_prime, 0.0, 1.0)
        elif r == spread_factor - 1:      # centroid sf-0.5: 1 above, ramp below
            plane = jnp.clip(x_prime - (spread_factor - 1.5), 0.0, 1.0)
        else:                             # interior triangular bumps
            plane = jnp.maximum(0.0, 1.0 - jnp.abs((r + 0.5) - x_prime))
        spread_ref[:, r * HID_PAD:(r + 1) * HID_PAD] = plane

    out_ref[...] = (jnp.dot(spread_ref[...], w2_ref[...],
                            preferred_element_type=jnp.float32) + b2_ref[...])


# --------------------------------------------------------------------------- #
# Wrapper
# --------------------------------------------------------------------------- #
def dense_norm_forward(x, w1_t, b1, gamma, beta, w2_t, b2, *, spread_factor,
                       tile_b=None):
    """x: (B, D_in) float32. Returns (B, out_shape) float32 (training-mode BN)."""
    del beta  # beta cancels exactly in x_prime; kept in the signature for parity.
    B, d_in = x.shape
    out_dim = w2_t.shape[1]
    out_pad = _round_up(out_dim, 128)
    sfh = spread_factor * HID_PAD

    def vmem_est(tb):
        f = 4
        return (2 * tb * d_in * f            # x tile, double-buffered
                + 2 * d_in * HID_PAD * f     # w1
                + 2 * sfh * out_pad * f      # w2
                + 2 * tb * out_pad * f       # out tile, double-buffered
                + tb * sfh * f               # spread scratch
                + 3 * tb * HID_PAD * f       # h / x_prime / plane working set
                + 8 * HID_PAD * f + 2 * out_pad * f)

    if tile_b is None:
        tile_b = min(1024, _round_up(B, 8))
        while tile_b > 64 and vmem_est(tile_b) > 24 * 1024 * 1024:
            tile_b //= 2
    tile_b = max(8, _round_up(tile_b, 8))
    nb = (B + tile_b - 1) // tile_b
    b_pad = nb * tile_b
    vmem_limit = int(min(48 * 1024 * 1024,                      # < v7x 64 MiB
                         max(16 * 1024 * 1024, vmem_est(tile_b) * 3 // 2)))

    xp = x if b_pad == B else jnp.pad(x, ((0, b_pad - B), (0, 0)))

    # Zero-pad hidden width 100 -> 128 (padded lanes stay exactly 0 through
    # fc1/ReLU and contribute nothing to fc2 because the matching w2 rows are 0).
    pad_h = HID_PAD - NUM_NEURONS
    w1_p = jnp.pad(w1_t, ((0, 0), (0, pad_h)))
    b1_p = jnp.pad(b1, ((0, 0), (0, pad_h)))
    gamma_p = jnp.pad(gamma, ((0, 0), (0, pad_h)))

    # fc2 weight: (100*sf, out) -> (sf, 128, out_pad) zero-padded -> (sf*128, out_pad)
    w2_r = w2_t.reshape(spread_factor, NUM_NEURONS, out_dim)
    w2_p = jnp.pad(w2_r, ((0, 0), (0, pad_h), (0, out_pad - out_dim)))
    w2_flat = w2_p.reshape(sfh, out_pad)
    b2_p = jnp.pad(b2, ((0, 0), (0, out_pad - out_dim)))

    # ---- pass 1: stats only (megacore-parallel, per-tile partials) ----------
    psum, psumsq = pl.pallas_call(
        _stats_kernel,
        out_shape=(jax.ShapeDtypeStruct((nb, 1, HID_PAD), jnp.float32),
                   jax.ShapeDtypeStruct((nb, 1, HID_PAD), jnp.float32)),
        grid=(nb,),
        in_specs=[
            pl.BlockSpec((tile_b, d_in), lambda i: (i, 0)),
            pl.BlockSpec((d_in, HID_PAD), lambda i: (0, 0)),
            pl.BlockSpec((1, HID_PAD), lambda i: (0, 0)),
        ],
        out_specs=(
            pl.BlockSpec((1, 1, HID_PAD), lambda i: (i, 0, 0)),
            pl.BlockSpec((1, 1, HID_PAD), lambda i: (i, 0, 0)),
        ),
        compiler_params=pltpu.CompilerParams(
            dimension_semantics=("parallel",),
            vmem_limit_bytes=vmem_limit),
    )(xp, w1_p, b1_p)

    # ---- tiny wrapper-side reduction + BN/spread folding (plain XLA) --------
    inv_b = jnp.float32(1.0 / B)
    s1 = jnp.sum(psum, axis=0).reshape(1, HID_PAD)       # shifted sum
    s2 = jnp.sum(psumsq, axis=0).reshape(1, HID_PAD)     # shifted sum of squares
    shift = jnp.maximum(b1_p, 0.0)
    m_sh = s1 * inv_b
    mean = shift + m_sh
    var = jnp.maximum(s2 * inv_b - m_sh * m_sh, 0.0)     # biased (BN training)
    inv_std = jax.lax.rsqrt(var + jnp.float32(BN_EPS))
    # gamma==0 (denom forced to 1 in the module) -> x_prime = 0 exactly.
    scale_vec = (jnp.float32(spread_factor / 8.0)
                 * (gamma_p != 0.0).astype(jnp.float32))
    a_vec = inv_std * scale_vec                          # (1, 128)
    c_vec = 4.0 * scale_vec - mean * a_vec               # (1, 128)

    # ---- pass 2: recompute fc1 + spread + fused fc2 (parallel over tiles) ---
    spread_kernel = functools.partial(_spread_fc2_kernel,
                                      spread_factor=spread_factor)
    out_p = pl.pallas_call(
        spread_kernel,
        out_shape=jax.ShapeDtypeStruct((b_pad, out_pad), jnp.float32),
        grid=(nb,),
        in_specs=[
            pl.BlockSpec((tile_b, d_in), lambda i: (i, 0)),
            pl.BlockSpec((d_in, HID_PAD), lambda i: (0, 0)),
            pl.BlockSpec((1, HID_PAD), lambda i: (0, 0)),
            pl.BlockSpec((1, HID_PAD), lambda i: (0, 0)),
            pl.BlockSpec((1, HID_PAD), lambda i: (0, 0)),
            pl.BlockSpec((sfh, out_pad), lambda i: (0, 0)),
            pl.BlockSpec((1, out_pad), lambda i: (0, 0)),
        ],
        out_specs=pl.BlockSpec((tile_b, out_pad), lambda i: (i, 0)),
        scratch_shapes=[pltpu.VMEM((tile_b, sfh), jnp.float32)],
        compiler_params=pltpu.CompilerParams(
            dimension_semantics=("parallel",),
            vmem_limit_bytes=vmem_limit),
    )(xp, w1_p, b1_p, a_vec, c_vec, w2_flat, b2_p)

    return out_p[:B, :out_dim]


# --------------------------------------------------------------------------- #
# Pure-JAX reference (faithful translation of the PyTorch forward).
# --------------------------------------------------------------------------- #
def _reference(x, w1_t, b1, gamma, beta, w2_t, b2, spread_factor):
    h = jnp.maximum(x @ w1_t + b1, 0.0)
    mean = jnp.mean(h, axis=0, keepdims=True)
    var = jnp.mean((h - mean) ** 2, axis=0, keepdims=True)    # biased (BN training)
    bn = gamma * (h - mean) / jnp.sqrt(var + BN_EPS) + beta
    t_min = gamma * (-4.0) + beta
    t_max = gamma * 4.0 + beta
    denom = jnp.where(t_max - t_min == 0.0, 1.0, t_max - t_min)
    xp = (bn - t_min) / denom * spread_factor
    planes = []
    for r in range(spread_factor):
        c = r + 0.5
        nc = jnp.maximum(0.0, 1.0 - jnp.abs(c - xp))
        cond = ((xp < c) & (c == 0.5)) | ((xp > c) & (c == spread_factor - 0.5))
        planes.append(jnp.where(cond, 1.0, nc))
    spread = jnp.concatenate(planes, axis=-1)
    return spread @ w2_t + b2


if __name__ == "__main__":
    # TODO(synk): BatchNorm1d running_mean/var buffer updates (a training-time side
    # effect that does not change the forward output) are not replicated.
    spread_factor = 4
    input_shape = 32
    out_shape = 10
    batch = 8
    spread_neurons = NUM_NEURONS * spread_factor

    key = jax.random.PRNGKey(0)
    kx, k1, k1b, k2, k2b, kg, kb, kx2 = jax.random.split(key, 8)

    x = jax.random.normal(kx, (batch, input_shape), dtype=jnp.float32)

    # fc1: xavier-uniform weight (100, input_shape) -> stored transposed
    lim1 = jnp.sqrt(6.0 / (NUM_NEURONS + input_shape))
    w1_t = jax.random.uniform(k1, (input_shape, NUM_NEURONS), jnp.float32, -lim1, lim1)
    b1 = jax.random.uniform(k1b, (1, NUM_NEURONS), jnp.float32,
                            -1.0 / jnp.sqrt(input_shape), 1.0 / jnp.sqrt(input_shape))

    # BatchNorm1d affine params (nontrivial but deterministic)
    gamma = 1.0 + 0.1 * jax.random.normal(kg, (1, NUM_NEURONS), dtype=jnp.float32)
    beta = 0.1 * jax.random.normal(kb, (1, NUM_NEURONS), dtype=jnp.float32)

    # fc2: xavier-uniform weight (out_shape, spread_neurons) -> stored transposed
    lim2 = jnp.sqrt(6.0 / (out_shape + spread_neurons))
    w2_t = jax.random.uniform(k2, (spread_neurons, out_shape), jnp.float32, -lim2, lim2)
    b2 = jax.random.uniform(k2b, (1, out_shape), jnp.float32,
                            -1.0 / jnp.sqrt(spread_neurons), 1.0 / jnp.sqrt(spread_neurons))

    # Test 1: batch fits a single tile exactly.
    out = dense_norm_forward(x, w1_t, b1, gamma, beta, w2_t, b2,
                             spread_factor=spread_factor)
    out = jax.block_until_ready(out)
    ref = _reference(x, w1_t, b1, gamma, beta, w2_t, b2, spread_factor)
    assert out.shape == (batch, out_shape)
    assert jnp.allclose(out, ref, atol=1e-4, rtol=1e-4), "kernel/reference mismatch"

    # Test 2: batch not a multiple of the tile (exercises mask-free padding path).
    batch2 = 20
    x2 = jax.random.normal(kx2, (batch2, input_shape), dtype=jnp.float32)
    out2 = dense_norm_forward(x2, w1_t, b1, gamma, beta, w2_t, b2,
                              spread_factor=spread_factor, tile_b=16)
    out2 = jax.block_until_ready(out2)
    ref2 = _reference(x2, w1_t, b1, gamma, beta, w2_t, b2, spread_factor)
    assert out2.shape == (batch2, out_shape)
    assert jnp.allclose(out2, ref2, atol=1e-4, rtol=1e-4), "kernel/reference mismatch (padded batch)"

    print("KERNEL_OK")
</pallas_src>

<mosaic_0001>
module attributes {stable_mosaic.version = 11 : i64} {
  func.func @_stats_kernel(%arg0: i32, %arg1: memref<8x32xf32, #tpu.memory_space<vmem>>, %arg2: memref<32x128xf32, #tpu.memory_space<vmem>>, %arg3: memref<1x128xf32, #tpu.memory_space<vmem>>, %arg4: memref<1x1x128xf32, #tpu.memory_space<vmem>>, %arg5: memref<1x1x128xf32, #tpu.memory_space<vmem>>) attributes {dimension_semantics = [#tpu.dimension_semantics<parallel>], iteration_bounds = array<i64: 1>, scalar_prefetch = 0 : i64, scratch_operands = 0 : i64, tpu.core_type = #tpu.core_type<tc>, window_params = [{transform_indices = @transform_0, window_bounds = array<i64: 8, 32>}, {pipeline_mode = #tpu.pipeline_mode<synchronous>, transform_indices = @transform_1, window_bounds = array<i64: 32, 128>}, {pipeline_mode = #tpu.pipeline_mode<synchronous>, transform_indices = @transform_2, window_bounds = array<i64: 1, 128>}, {transform_indices = @transform_3, window_bounds = array<i64: 1, 1, 128>}, {transform_indices = @transform_4, window_bounds = array<i64: 1, 1, 128>}]} {
    %c0 = arith.constant 0 : index
    %c0_0 = arith.constant 0 : index
    %0 = vector.load %arg3[%c0, %c0_0] : memref<1x128xf32, #tpu.memory_space<vmem>>, vector<1x128xf32>
    %c0_1 = arith.constant 0 : index
    %c0_2 = arith.constant 0 : index
    %1 = vector.load %arg1[%c0_1, %c0_2] : memref<8x32xf32, #tpu.memory_space<vmem>>, vector<8x32xf32>
    %c0_3 = arith.constant 0 : index
    %c0_4 = arith.constant 0 : index
    %2 = vector.load %arg2[%c0_3, %c0_4] : memref<32x128xf32, #tpu.memory_space<vmem>>, vector<32x128xf32>
    %cst = arith.constant dense<0.000000e+00> : vector<8x128xf32>
    %3 = tpu.matmul %1, %2, %cst {dimension_numbers = #tpu.dot_dimension_numbers<[1], [0], [0], [1], [0, 0, 1, 1], [], []>} : vector<8x32xf32>, vector<32x128xf32>, vector<8x128xf32> -> vector<8x128xf32>
    %4 = vector.broadcast %0 : vector<1x128xf32> to vector<8x128xf32>
    %5 = arith.addf %3, %4 : vector<8x128xf32>
    %cst_5 = arith.constant 0.000000e+00 : f32
    %6 = vector.broadcast %cst_5 : f32 to vector<8x128xf32>
    %7 = arith.maximumf %5, %6 : vector<8x128xf32>
    %cst_6 = arith.constant 0.000000e+00 : f32
    %8 = vector.broadcast %cst_6 : f32 to vector<1x128xf32>
    %9 = arith.maximumf %0, %8 : vector<1x128xf32>
    %10 = vector.broadcast %9 : vector<1x128xf32> to vector<8x128xf32>
    %11 = arith.subf %7, %10 : vector<8x128xf32>
    %cst_7 = arith.constant dense<0.000000e+00> : vector<128xf32>
    %12 = vector.multi_reduction <add>, %11, %cst_7 [0] : vector<8x128xf32> to vector<128xf32>
    %13 = vector.shape_cast %12 : vector<128xf32> to vector<1x128xf32>
    %14 = vector.shape_cast %13 : vector<1x128xf32> to vector<1x1x128xf32>
    %c0_8 = arith.constant 0 : index
    %c0_9 = arith.constant 0 : index
    %c0_10 = arith.constant 0 : index
    %15 = vector.load %arg4[%c0_8, %c0_9, %c0_10] : memref<1x1x128xf32, #tpu.memory_space<vmem>>, vector<1x1x128xf32>
    tpu.vector_store %arg4[%c0_8, %c0_9, %c0_10], %14 {strides = array<i32>} : memref<1x1x128xf32, #tpu.memory_space<vmem>>, vector<1x1x128xf32>,
    %16 = arith.mulf %11, %11 : vector<8x128xf32>
    %cst_11 = arith.constant dense<0.000000e+00> : vector<128xf32>
    %17 = vector.multi_reduction <add>, %16, %cst_11 [0] : vector<8x128xf32> to vector<128xf32>
    %18 = vector.shape_cast %17 : vector<128xf32> to vector<1x128xf32>
    %19 = vector.shape_cast %18 : vector<1x128xf32> to vector<1x1x128xf32>
    %c0_12 = arith.constant 0 : index
    %c0_13 = arith.constant 0 : index
    %c0_14 = arith.constant 0 : index
    %20 = vector.load %arg5[%c0_12, %c0_13, %c0_14] : memref<1x1x128xf32, #tpu.memory_space<vmem>>, vector<1x1x128xf32>
    tpu.vector_store %arg5[%c0_12, %c0_13, %c0_14], %19 {strides = array<i32>} : memref<1x1x128xf32, #tpu.memory_space<vmem>>, vector<1x1x128xf32>,
    return
  }
  func.func @transform_0(%arg0: i32) -> (i32, i32) {
    %c0_i32 = arith.constant 0 : i32
    %c0_i32_0 = arith.constant 0 : i32
    return %arg0, %c0_i32 : i32, i32
  }
  func.func @transform_1(%arg0: i32) -> (i32, i32) {
    %c0_i32 = arith.constant 0 : i32
    %c0_i32_0 = arith.constant 0 : i32
    %c0_i32_1 = arith.constant 0 : i32
    return %c0_i32, %c0_i32_0 : i32, i32
  }
  func.func @transform_2(%arg0: i32) -> (i32, i32) {
    %c0_i32 = arith.constant 0 : i32
    %c0_i32_0 = arith.constant 0 : i32
    %c0_i32_1 = arith.constant 0 : i32
    return %c0_i32, %c0_i32_0 : i32, i32
  }
  func.func @transform_3(%arg0: i32) -> (i32, i32, i32) {
    %c0_i32 = arith.constant 0 : i32
    %c0_i32_0 = arith.constant 0 : i32
    %c0_i32_1 = arith.constant 0 : i32
    return %arg0, %c0_i32, %c0_i32_0 : i32, i32, i32
  }
  func.func @transform_4(%arg0: i32) -> (i32, i32, i32) {
    %c0_i32 = arith.constant 0 : i32
    %c0_i32_0 = arith.constant 0 : i32
    %c0_i32_1 = arith.constant 0 : i32
    return %arg0, %c0_i32, %c0_i32_0 : i32, i32, i32
  }
}

</mosaic_0001>

<llo_original>
// kernel: tpu_custom_call.1
$region0: #{tpu_custom_call.1}
  #allocation0 [shape = 'u32[]', space=smem, size = 0x4, offset = 0x4, fixed_abs, tag = 'smem constant byte address 0x4 - core index']
  #allocation1 [shape = 'u32[144,128]{1,0:T(1,128)}', space=vmem, size = 0x12000, scoped, tag = 'internal scratch']
  %s0 = inlined_call_operand.hbm [shape: f32[8,32], index: 0, kind: input, shape index: {}]
  %s1 = inlined_call_operand.hbm [shape: f32[32,128], index: 1, kind: input, shape index: {}]
  %s2 = inlined_call_operand.vmem [shape: f32[1,128], index: 2, kind: input, shape index: {}]
  %s3 = inlined_call_operand.hbm [shape: f32[1,1,128], index: 3, kind: output, shape index: {0}]
  %s4 = inlined_call_operand.hbm [shape: f32[1,1,128], index: 4, kind: output, shape index: {1}]
  %5 = xla_tuple %s3, %s4
  %s6 = sld [smem:[#allocation0]]
  $region38: #{tpu_custom_call.1} parent=0
    _
  %s8 = ssub.s32 1, %s6
  %s9 = scalar_select 0, %s8, %s6
  $region1: #{tpu_custom_call.1} parent=0
    #allocation2 [shape = 'u8[4096]{0}', space=vmem, size = 0x1000, scoped, tag = 'input window, operand 0, single buffered']
    #allocation3 [shape = 's32[1]{0}', space=sflag, size = 0x4, scoped, tag = 'scoped memory for tpu_custom_call.1']
    #allocation4 [shape = 's32[1]{0}', space=sflag, size = 0x4, scoped, tag = 'scoped memory for tpu_custom_call.1']
    #allocation5 [shape = 'u8[16384]{0}', space=vmem, size = 0x4000, scoped, tag = 'input window, operand 1, single buffered']
    #allocation6 [shape = 's32[1]{0}', space=sflag, size = 0x4, scoped, tag = 'scoped memory for tpu_custom_call.1']
    #allocation7 [shape = 'u8[512]{0}', space=vmem, size = 0x400, scoped, tag = 'output window, operand 0, single buffered']
    #allocation8 [shape = 'u8[512]{0}', space=vmem, size = 0x400, scoped, tag = 'output window, operand 1, single buffered']
    #allocation9 [shape = 's32[1]{0}', space=sflag, size = 0x4, scoped, tag = 'scoped memory for tpu_custom_call.1']
    %10 = vsyncpa [#allocation3], 0
    %11 = vsyncpa [#allocation6], 0
    %12 = vsyncpa [#allocation4], 0
    %13 = vsyncpa [#allocation9], 0
    // Predicated region
    $region2: #{tpu_custom_call.1} parent=1 // pred_check
      _
    $region3: #{tpu_custom_call.1} parent=1 // pred_check_branch
      %15 = sbr.rel (0) target = $region5
    $region4: #{tpu_custom_call.1} parent=1 // pred_region
      %s17 = ssub.s32 128, 128
      %18 = vsyncadd [#allocation3], %s17
      %s20 = sshll.u32 [#allocation2], 4
      %s21 = int_to_ptr.vmem [resolvable:$true] %s20
      %23 = dma.hbm_to_vmem [thread:$0]  %s0, 128, %s21, [#allocation3]
    $region5: #{tpu_custom_call.1} parent=1 // pred_fallthru
      _
    // Predicated region
    $region6: #{tpu_custom_call.1} parent=1 // pred_check
      _
    $region7: #{tpu_custom_call.1} parent=1 // pred_check_branch
      %25 = sbr.rel (0) target = $region9
    $region8: #{tpu_custom_call.1} parent=1 // pred_region
      %s27 = ssub.s32 512, 512
      %28 = vsyncadd [#allocation6], %s27
      %s29 = sshll.u32 [#allocation5], 4
      %s30 = int_to_ptr.vmem [resolvable:$true] %s29
      %35 = dma.hbm_to_vmem [thread:$0]  %s1, 512, %s30, [#allocation6], 128, 128, 8
    $region9: #{tpu_custom_call.1} parent=1 // pred_fallthru
      _
    // Predicated region
    $region10: #{tpu_custom_call.1} parent=1 // pred_check
      _
    $region11: #{tpu_custom_call.1} parent=1 // pred_check_branch
      %37 = sbr.rel (0) target = $region13
    $region12: #{tpu_custom_call.1} parent=1 // pred_region
      _
    $region13: #{tpu_custom_call.1} parent=1 // pred_fallthru
      _
    // Predicated region
    $region14: #{tpu_custom_call.1} parent=1 // pred_check
      _
    $region15: #{tpu_custom_call.1} parent=1 // pred_check_branch
      %39 = sbr.rel (0) target = $region17
    $region16: #{tpu_custom_call.1} parent=1 // pred_region
      %40 = dma.done [#allocation3], 128
    $region17: #{tpu_custom_call.1} parent=1 // pred_fallthru
      _
    // Predicated region
    $region18: #{tpu_custom_call.1} parent=1 // pred_check
      _
    $region19: #{tpu_custom_call.1} parent=1 // pred_check_branch
      %42 = sbr.rel (0) target = $region21
    $region20: #{tpu_custom_call.1} parent=1 // pred_region
      %43 = dma.done [#allocation6], 512
    $region21: #{tpu_custom_call.1} parent=1 // pred_fallthru
      _
    %v44 = vld [vmem:[%s2] sm:$0x1]
    %v45 = vld [vmem:[#allocation2] sm:$0xff]
    %v46 = vld [vmem:[#allocation5] sm:$0xff]
    %v47 = vld [vmem:[#allocation5 + $0x8] sm:$0xff]
    %v48 = vld [vmem:[#allocation5 + $0x10] sm:$0xff]
    %v49 = vld [vmem:[#allocation5 + $0x18] sm:$0xff]
    %v51 = vlaneseq
    %v52 = vshrl.u32 %v51, 7
    %v53 = vsub.s32 0, %v52
    %v54 = vrot.slane %v44, %v53
    %vm56 = vcmask 261120
    %v58 = vsel %vm56, %v45, 0
    %60 = vmatprep.subr.mxu0 0.0
    %61 = vmatpush1.msra.mxu0 0.0
    %62 = vmatprep.subr.mxu0 0.0
    %63 = vmatpush1.msra.mxu0 0.0
    %64 = vmatprep.subr.mxu0 0.0
    %65 = vmatpush1.msra.mxu0 0.0
    %66 = vmatprep.subr.mxu0 0.0
    %67 = vmatpush1.msra.mxu0 0.0
    %68 = vmatprep.subr.mxu0 0.0
    %69 = vmatpush1.msra.mxu0 0.0
    %70 = vmatprep.subr.mxu0 0.0
    %71 = vmatpush1.msra.mxu0 0.0
    %72 = vmatprep.subr.mxu0 0.0
    %73 = vmatpush1.msra.mxu0 0.0
    %74 = vmatprep.subr.mxu0 0.0
    %75 = vmatpush1.msra.mxu0 0.0
    %76 = vmatprep.subr.mxu0 0.0
    %77 = vmatpush1.msra.mxu0 0.0
    %78 = vmatprep.subr.mxu0 0.0
    %79 = vmatpush1.msra.mxu0 0.0
    %80 = vmatprep.subr.mxu0 0.0
    %81 = vmatpush1.msra.mxu0 0.0
    %82 = vmatprep.subr.mxu0 0.0
    %83 = vmatpush1.msra.mxu0 0.0
    %84 = vmatprep.subr.mxu0 0.0
    %85 = vmatpush1.msra.mxu0 %v49
    %86 = vmatprep.subr.mxu0 0.0
    %87 = vmatpush1.msra.mxu0 %v48
    %88 = vmatprep.subr.mxu0 0.0
    %89 = vmatpush1.msra.mxu0 %v47
    %90 = vmatprep.subr.mxu0 0.0
    %91 = vmatpush1.msra.mxu0 %v46
    %92 = vmatprep.subr.mxu0 0.0
    %93 = vmatpush2.msra.mxu0 0.0
    %94 = vmatprep.subr.mxu0 0.0
    %95 = vmatpush2.msra.mxu0 0.0
    %96 = vmatprep.subr.mxu0 0.0
    %97 = vmatpush2.msra.mxu0 0.0
    %98 = vmatprep.subr.mxu0 0.0
    %99 = vmatpush2.msra.mxu0 0.0
    %100 = vmatprep.subr.mxu0 0.0
    %101 = vmatpush2.msra.mxu0 0.0
    %102 = vmatprep.subr.mxu0 0.0
    %103 = vmatpush2.msra.mxu0 0.0
    %104 = vmatprep.subr.mxu0 0.0
    %105 = vmatpush2.msra.mxu0 0.0
    %106 = vmatprep.subr.mxu0 0.0
    %107 = vmatpush2.msra.mxu0 0.0
    %108 = vmatprep.subr.mxu0 0.0
    %109 = vmatpush2.msra.mxu0 0.0
    %110 = vmatprep.subr.mxu0 0.0
    %111 = vmatpush2.msra.mxu0 0.0
    %112 = vmatprep.subr.mxu0 0.0
    %113 = vmatpush2.msra.mxu0 0.0
    %114 = vmatprep.subr.mxu0 0.0
    %115 = vmatpush2.msra.mxu0 0.0
    %116 = vmatprep.subr.mxu0 0.0
    %117 = vmatpush2.msra.mxu0 0.0
    %118 = vmatprep.subr.mxu0 0.0
    %119 = vmatpush2.msra.mxu0 0.0
    %120 = vmatprep.subr.mxu0 0.0
    %121 = vmatpush2.msra.mxu0 0.0
    %122 = vmatprep.subr.mxu0 0.0
    %123 = vmatpush2.msra.mxu0 0.0
    %124 = vmatprep.mubr.f32.mxu0 0.0
    %125 = vmatmul.mubr.f32.gmra.mxu0 %v58
    %v126 = vpop.f32.mrf.mxu0
    %v127 = vadd.f32 %v54, %v126
    %v128 = vpop.f32.mrf.mxu0
    %129 = vdwg.mxu0
    %v130 = vmax.f32 %v127, 0.0
    %v131 = vmax.f32 %v44, 0.0
    %v133 = vlaneseq
    %v134 = vshrl.u32 %v133, 7
    %v135 = vsub.s32 0, %v134
    %v136 = vrot.slane %v131, %v135
    %v138 = vsub.f32 %v130, %v136
    %v139 = vrot.slane %v138, 4
    %v140 = vadd.f32 %v138, %v139
    %v141 = vrot.slane %v140, 2
    %v142 = vadd.f32 %v140, %v141
    %v143 = vrot.slane %v142, 1
    %v144 = vadd.f32 %v142, %v143
    %145 = vst [vmem:[#allocation7] sm:$0x1] %v144
    %v146 = vmul.f32 %v138, %v138
    %v147 = vrot.slane %v146, 4
    %v148 = vadd.f32 %v146, %v147
    %v149 = vrot.slane %v148, 2
    %v150 = vadd.f32 %v148, %v149
    %v151 = vrot.slane %v150, 1
    %v152 = vadd.f32 %v150, %v151
    %153 = vst [vmem:[#allocation8] sm:$0x1] %v152
    // Predicated region
    $region22: #{tpu_custom_call.1} parent=1 // pred_check
      _
    $region23: #{tpu_custom_call.1} parent=1 // pred_check_branch
      %155 = sbr.rel (0) target = $region25
    $region24: #{tpu_custom_call.1} parent=1 // pred_region
      %s157 = ssub.s32 16, 16
      %158 = vsyncadd [#allocation4], %s157
      %s160 = sshll.u32 [#allocation7], 4
      %s161 = int_to_ptr.vmem [resolvable:$true] %s160
      %163 = dma.vmem_to_hbm [thread:$0]  %s161, 16, %s3, [#allocation4]
    $region25: #{tpu_custom_call.1} parent=1 // pred_fallthru
      _
    // Predicated region
    $region26: #{tpu_custom_call.1} parent=1 // pred_check
      _
    $region27: #{tpu_custom_call.1} parent=1 // pred_check_branch
      %165 = sbr.rel (0) target = $region29
    $region28: #{tpu_custom_call.1} parent=1 // pred_region
      %s167 = ssub.s32 16, 16
      %168 = vsyncadd [#allocation9], %s167
      %s170 = sshll.u32 [#allocation8], 4
      %s171 = int_to_ptr.vmem [resolvable:$true] %s170
      %173 = dma.vmem_to_hbm [thread:$0]  %s171, 16, %s4, [#allocation9]
    $region29: #{tpu_custom_call.1} parent=1 // pred_fallthru
      _
    // Predicated region
    $region30: #{tpu_custom_call.1} parent=1 // pred_check
      _
    $region31: #{tpu_custom_call.1} parent=1 // pred_check_branch
      %175 = sbr.rel (0) target = $region33
    $region32: #{tpu_custom_call.1} parent=1 // pred_region
      %176 = dma.done [#allocation4], 16
    $region33: #{tpu_custom_call.1} parent=1 // pred_fallthru
      _
    // Predicated region
    $region34: #{tpu_custom_call.1} parent=1 // pred_check
      _
    $region35: #{tpu_custom_call.1} parent=1 // pred_check_branch
      %178 = sbr.rel (0) target = $region37
    $region36: #{tpu_custom_call.1} parent=1 // pred_region
      %179 = dma.done [#allocation9], 16
    $region37: #{tpu_custom_call.1} parent=1 // pred_fallthru
      _
    %180 = vsyncpa [#allocation3], 1
    %181 = vsyncpa [#allocation6], 1
    %182 = vsyncpa [#allocation4], 1
    %183 = vsyncpa [#allocation9], 1

</llo_original>
